<compile_context>
chip_gen: v6e
topology: v6e:2x2x1
jax: 0.10.0
libtpu: 0.0.40
codegen_flags: <defaults>
</compile_context>

<pallas_src>
import jax
import jax.numpy as jnp
from jax.experimental import pallas as pl
from jax.experimental.pallas import tpu as pltpu

EPS = 1e-5  # nn.InstanceNorm1d default eps


def _add_inorm_kernel(x1_ref, x2_ref, gb_ref, out_ref):
    """x1_ref, x2_ref, out_ref : (B_BLK, n, E)   (n, E are the full dims)
       gb_ref                  : (2, E) f32, row 0 = gamma, row 1 = beta
    """
    x = x1_ref[...].astype(jnp.float32) + x2_ref[...].astype(jnp.float32)

    # Per-(batch, channel) statistics over the sequence axis (axis=1):
    # a cheap sublane/XLU reduce with an implicit broadcast back.
    mean = jnp.mean(x, axis=1, keepdims=True)          # (B_BLK, 1, E)
    d = x - mean
    var = jnp.mean(d * d, axis=1, keepdims=True)       # biased variance
    inv = jax.lax.rsqrt(var + EPS)

    gamma = gb_ref[0:1, :]                              # (1, E) -> broadcasts on lanes
    beta = gb_ref[1:2, :]
    out_ref[...] = (d * inv * gamma + beta).astype(out_ref.dtype)


def _vmem_capacity_bytes():
    """Physical VMEM per core for the current generation (conservative fallback)."""
    try:
        cap = getattr(pltpu.get_tpu_info(), "vmem_capacity_bytes", None)
        if cap:
            return int(cap)
    except Exception:
        pass
    return 64 << 20  # v7x-sized fallback; also safe on v5e/v6e


def _choose_batch_block(B, row_bytes_f32, budget_bytes):
    """Pick B_BLK (rows per grid step).

    Per-block live VMEM ~= x1/x2/out double-buffered (6 slabs) plus f32
    intermediates inside the kernel (~3-4 slabs) -> budget / (10 * row_bytes).
    Prefers divisors of B that are multiples of 8 and give an EVEN number of
    grid steps (v7x megacore). Returns a cap-sized block (caller pads) if B has
    no clean divisor.
    """
    cap = int(budget_bytes // (10 * row_bytes_f32))
    cap = max(8, cap - (cap % 8))

    if B <= cap:
        # Whole batch fits in one block; if it splits nicely, take 2 parallel steps.
        if B >= 16 and B % 2 == 0 and (B // 2) % 8 == 0:
            return B // 2
        return B

    best = None
    best_even = None
    for cand in range(8, cap + 1, 8):
        if B % cand == 0:
            best = cand
            if (B // cand) % 2 == 0:
                best_even = cand
    if best_even is not None:
        return best_even
    if best is not None:
        return best
    # No multiple-of-8 divisor <= cap (odd / prime B): use the cap and let the
    # wrapper pad the batch to a multiple (cdiv grid + slice of the tail).
    return cap


def add_and_instance_norm(input1, input2, gamma, beta):
    """input1, input2: (B, n, E); gamma, beta: (E,). Returns (B, n, E) in input dtype."""
    B, n, E = input1.shape
    dtype = input1.dtype
    x1 = input1
    x2 = input2.astype(dtype)

    # Affine params, stacked into one tiny (2, E) f32 ref.
    gb = jnp.stack([gamma.astype(jnp.float32), beta.astype(jnp.float32)], axis=0)

    vmem_cap = _vmem_capacity_bytes()
    vmem_limit = int(vmem_cap * 0.7)               # ~45 MiB on v7x, ~90 MiB on v5e/v6e
    budget = max(1 << 20, vmem_limit - (1 << 20))  # headroom for gb + misc

    row_bytes_f32 = n * E * 4                      # intermediates are f32 regardless of I/O dtype
    B_BLK = _choose_batch_block(B, row_bytes_f32, budget)

    num_blocks = -(-B // B_BLK)                    # cdiv
    Bp = num_blocks * B_BLK
    if Bp != B:
        pad = Bp - B
        x1 = jnp.pad(x1, ((0, pad), (0, 0), (0, 0)))
        x2 = jnp.pad(x2, ((0, pad), (0, 0), (0, 0)))

    out = pl.pallas_call(
        _add_inorm_kernel,
        out_shape=jax.ShapeDtypeStruct((Bp, n, E), dtype),
        grid_spec=pltpu.PrefetchScalarGridSpec(
            num_scalar_prefetch=0,
            grid=(num_blocks,),
            in_specs=[
                pl.BlockSpec((B_BLK, n, E), lambda i: (i, 0, 0)),   # input1 slab
                pl.BlockSpec((B_BLK, n, E), lambda i: (i, 0, 0)),   # input2 slab
                pl.BlockSpec((2, E), lambda i: (0, 0)),             # gamma/beta (tiny, resident)
            ],
            out_specs=pl.BlockSpec((B_BLK, n, E), lambda i: (i, 0, 0)),
        ),
        compiler_params=pltpu.CompilerParams(
            dimension_semantics=("parallel",),
            vmem_limit_bytes=vmem_limit,
        ),
    )(x1, x2, gb)

    return out[:B] if Bp != B else out


def reference(input1, input2, gamma, beta):
    """Pure-JAX mirror of the PyTorch forward (InstanceNorm1d over seq, affine)."""
    a = (input1 + input2).astype(jnp.float32)
    m = jnp.mean(a, axis=1, keepdims=True)
    v = jnp.mean((a - m) ** 2, axis=1, keepdims=True)                # biased variance
    return (a - m) * jax.lax.rsqrt(v + EPS) * gamma + beta


if __name__ == "__main__":
    key = jax.random.PRNGKey(0)
    k1, k2, kg, kb, k3, k4, k5, k6 = jax.random.split(key, 8)

    # Small shapes consistent with the module: batch=2, seq=8, embedding_dim=32.
    B, n, E = 2, 8, 32
    x1 = jax.random.normal(k1, (B, n, E), jnp.float32)
    x2 = jax.random.normal(k2, (B, n, E), jnp.float32)
    gamma = 1.0 + 0.1 * jax.random.normal(kg, (E,), jnp.float32)
    beta = 0.1 * jax.random.normal(kb, (E,), jnp.float32)

    out = jax.block_until_ready(add_and_instance_norm(x1, x2, gamma, beta))
    ref = reference(x1, x2, gamma, beta)
    assert out.shape == (B, n, E)
    assert jnp.allclose(out, ref, atol=1e-4, rtol=1e-4), \
        float(jnp.max(jnp.abs(out - ref)))

    # Larger batch exercises the multi-step, megacore-friendly parallel grid path.
    Bb = 32
    y1 = jax.random.normal(k3, (Bb, n, E), jnp.float32)
    y2 = jax.random.normal(k4, (Bb, n, E), jnp.float32)
    out_b = jax.block_until_ready(add_and_instance_norm(y1, y2, gamma, beta))
    ref_b = reference(y1, y2, gamma, beta)
    assert jnp.allclose(out_b, ref_b, atol=1e-4, rtol=1e-4), \
        float(jnp.max(jnp.abs(out_b - ref_b)))

    # Odd batch that isn't a nice multiple -> single-block (or padded) path.
    Bo = 7
    z1 = jax.random.normal(k5, (Bo, n, E), jnp.float32)
    z2 = jax.random.normal(k6, (Bo, n, E), jnp.float32)
    out_o = jax.block_until_ready(add_and_instance_norm(z1, z2, gamma, beta))
    ref_o = reference(z1, z2, gamma, beta)
    assert out_o.shape == (Bo, n, E)
    assert jnp.allclose(out_o, ref_o, atol=1e-4, rtol=1e-4), \
        float(jnp.max(jnp.abs(out_o - ref_o)))

    print("KERNEL_OK")
</pallas_src>

<mosaic_0001>
module attributes {stable_mosaic.version = 11 : i64} {
  func.func @_add_inorm_kernel(%arg0: i32, %arg1: memref<2x8x32xf32, #tpu.memory_space<vmem>>, %arg2: memref<2x8x32xf32, #tpu.memory_space<vmem>>, %arg3: memref<2x32xf32, #tpu.memory_space<vmem>>, %arg4: memref<2x8x32xf32, #tpu.memory_space<vmem>>) attributes {dimension_semantics = [#tpu.dimension_semantics<parallel>], iteration_bounds = array<i64: 1>, scalar_prefetch = 0 : i64, scratch_operands = 0 : i64, tpu.core_type = #tpu.core_type<tc>, window_params = [{transform_indices = @transform_0, window_bounds = array<i64: 2, 8, 32>}, {transform_indices = @transform_1, window_bounds = array<i64: 2, 8, 32>}, {pipeline_mode = #tpu.pipeline_mode<synchronous>, transform_indices = @transform_2, window_bounds = array<i64: 2, 32>}, {transform_indices = @transform_3, window_bounds = array<i64: 2, 8, 32>}]} {
    %c0 = arith.constant 0 : index
    %c0_0 = arith.constant 0 : index
    %c0_1 = arith.constant 0 : index
    %0 = vector.load %arg1[%c0, %c0_0, %c0_1] : memref<2x8x32xf32, #tpu.memory_space<vmem>>, vector<2x8x32xf32>
    %c0_2 = arith.constant 0 : index
    %c0_3 = arith.constant 0 : index
    %c0_4 = arith.constant 0 : index
    %1 = vector.load %arg2[%c0_2, %c0_3, %c0_4] : memref<2x8x32xf32, #tpu.memory_space<vmem>>, vector<2x8x32xf32>
    %2 = arith.addf %0, %1 : vector<2x8x32xf32>
    %cst = arith.constant dense<0.000000e+00> : vector<2x32xf32>
    %3 = vector.multi_reduction <add>, %2, %cst [1] : vector<2x8x32xf32> to vector<2x32xf32>
    %4 = vector.shape_cast %3 : vector<2x32xf32> to vector<2x1x32xf32>
    %cst_5 = arith.constant 8.000000e+00 : f32
    %5 = vector.broadcast %cst_5 : f32 to vector<2x1x32xf32>
    %6 = arith.divf %4, %5 : vector<2x1x32xf32>
    %7 = vector.broadcast %6 : vector<2x1x32xf32> to vector<2x8x32xf32>
    %8 = arith.subf %2, %7 : vector<2x8x32xf32>
    %9 = arith.mulf %8, %8 : vector<2x8x32xf32>
    %cst_6 = arith.constant dense<0.000000e+00> : vector<2x32xf32>
    %10 = vector.multi_reduction <add>, %9, %cst_6 [1] : vector<2x8x32xf32> to vector<2x32xf32>
    %11 = vector.shape_cast %10 : vector<2x32xf32> to vector<2x1x32xf32>
    %cst_7 = arith.constant 8.000000e+00 : f32
    %12 = vector.broadcast %cst_7 : f32 to vector<2x1x32xf32>
    %13 = arith.divf %11, %12 : vector<2x1x32xf32>
    %cst_8 = arith.constant 9.99999974E-6 : f32
    %14 = vector.broadcast %cst_8 : f32 to vector<2x1x32xf32>
    %15 = arith.addf %13, %14 : vector<2x1x32xf32>
    %16 = math.rsqrt %15 : vector<2x1x32xf32>
    %c0_9 = arith.constant 0 : index
    %c0_10 = arith.constant 0 : index
    %17 = vector.load %arg3[%c0_9, %c0_10] : memref<2x32xf32, #tpu.memory_space<vmem>>, vector<1x32xf32>
    %c1 = arith.constant 1 : index
    %c0_11 = arith.constant 0 : index
    %18 = vector.load %arg3[%c1, %c0_11] : memref<2x32xf32, #tpu.memory_space<vmem>>, vector<1x32xf32>
    %19 = vector.broadcast %16 : vector<2x1x32xf32> to vector<2x8x32xf32>
    %20 = arith.mulf %8, %19 : vector<2x8x32xf32>
    %21 = vector.shape_cast %17 : vector<1x32xf32> to vector<1x1x32xf32>
    %22 = vector.broadcast %21 : vector<1x1x32xf32> to vector<2x8x32xf32>
    %23 = arith.mulf %20, %22 : vector<2x8x32xf32>
    %24 = vector.shape_cast %18 : vector<1x32xf32> to vector<1x1x32xf32>
    %25 = vector.broadcast %24 : vector<1x1x32xf32> to vector<2x8x32xf32>
    %26 = arith.addf %23, %25 : vector<2x8x32xf32>
    %c0_12 = arith.constant 0 : index
    %c0_13 = arith.constant 0 : index
    %c0_14 = arith.constant 0 : index
    %27 = vector.load %arg4[%c0_12, %c0_13, %c0_14] : memref<2x8x32xf32, #tpu.memory_space<vmem>>, vector<2x8x32xf32>
    tpu.vector_store %arg4[%c0_12, %c0_13, %c0_14], %26 {strides = array<i32>} : memref<2x8x32xf32, #tpu.memory_space<vmem>>, vector<2x8x32xf32>,
    return
  }
  func.func @transform_0(%arg0: i32) -> (i32, i32, i32) {
    %c0_i32 = arith.constant 0 : i32
    %c0_i32_0 = arith.constant 0 : i32
    %c0_i32_1 = arith.constant 0 : i32
    return %arg0, %c0_i32, %c0_i32_0 : i32, i32, i32
  }
  func.func @transform_1(%arg0: i32) -> (i32, i32, i32) {
    %c0_i32 = arith.constant 0 : i32
    %c0_i32_0 = arith.constant 0 : i32
    %c0_i32_1 = arith.constant 0 : i32
    return %arg0, %c0_i32, %c0_i32_0 : i32, i32, i32
  }
  func.func @transform_2(%arg0: i32) -> (i32, i32) {
    %c0_i32 = arith.constant 0 : i32
    %c0_i32_0 = arith.constant 0 : i32
    %c0_i32_1 = arith.constant 0 : i32
    return %c0_i32, %c0_i32_0 : i32, i32
  }
  func.func @transform_3(%arg0: i32) -> (i32, i32, i32) {
    %c0_i32 = arith.constant 0 : i32
    %c0_i32_0 = arith.constant 0 : i32
    %c0_i32_1 = arith.constant 0 : i32
    return %arg0, %c0_i32, %c0_i32_0 : i32, i32, i32
  }
}

</mosaic_0001>

<llo_original>
// kernel: tpu_custom_call.1
$region0: #{tpu_custom_call.1}
  #allocation0 [shape = 'u32[]', space=smem, size = 0x4, offset = 0x4, fixed_abs, tag = 'smem constant byte address 0x4 - core index']
  #allocation1 [shape = 'u32[144,128]{1,0:T(1,128)}', space=vmem, size = 0x12000, scoped, tag = 'internal scratch']
  %s0 = inlined_call_operand.hbm [shape: f32[2,8,32], index: 0, kind: input, shape index: {}]
  %s1 = inlined_call_operand.hbm [shape: f32[2,8,32], index: 1, kind: input, shape index: {}]
  %s2 = inlined_call_operand.vmem [shape: f32[2,32], index: 2, kind: input, shape index: {}]
  %s3 = inlined_call_operand.hbm [shape: f32[2,8,32], index: 3, kind: output, shape index: {}]
  %s4 = sld [smem:[#allocation0]]
  $region30: #{tpu_custom_call.1} parent=0
    _
  %s6 = ssub.s32 1, %s4
  %s7 = scalar_select 0, %s6, %s4
  $region1: #{tpu_custom_call.1} parent=0
    #allocation2 [shape = 'u8[8192]{0}', space=vmem, size = 0x2000, scoped, tag = 'input window, operand 0, single buffered']
    #allocation3 [shape = 's32[1]{0}', space=sflag, size = 0x4, scoped, tag = 'scoped memory for tpu_custom_call.1']
    #allocation4 [shape = 's32[1]{0}', space=sflag, size = 0x4, scoped, tag = 'scoped memory for tpu_custom_call.1']
    #allocation5 [shape = 'u8[8192]{0}', space=vmem, size = 0x2000, scoped, tag = 'input window, operand 1, single buffered']
    #allocation6 [shape = 's32[1]{0}', space=sflag, size = 0x4, scoped, tag = 'scoped memory for tpu_custom_call.1']
    #allocation7 [shape = 'u8[8192]{0}', space=vmem, size = 0x2000, scoped, tag = 'output window, operand 0, single buffered']
    %8 = vsyncpa [#allocation3], 0
    %9 = vsyncpa [#allocation6], 0
    %10 = vsyncpa [#allocation4], 0
    // Predicated region
    $region2: #{tpu_custom_call.1} parent=1 // pred_check
      _
    $region3: #{tpu_custom_call.1} parent=1 // pred_check_branch
      %12 = sbr.rel (0) target = $region5
    $region4: #{tpu_custom_call.1} parent=1 // pred_region
      %s14 = ssub.s32 256, 256
      %15 = vsyncadd [#allocation3], %s14
      %s16 = sshll.u32 [#allocation2], 4
      %s17 = int_to_ptr.vmem [resolvable:$true] %s16
      %22 = dma.hbm_to_vmem [thread:$0]  %s0, 256, %s17, [#allocation3], 128, 128, 8
    $region5: #{tpu_custom_call.1} parent=1 // pred_fallthru
      _
    // Predicated region
    $region6: #{tpu_custom_call.1} parent=1 // pred_check
      _
    $region7: #{tpu_custom_call.1} parent=1 // pred_check_branch
      %24 = sbr.rel (0) target = $region9
    $region8: #{tpu_custom_call.1} parent=1 // pred_region
      %s26 = ssub.s32 256, 256
      %27 = vsyncadd [#allocation6], %s26
      %s28 = sshll.u32 [#allocation5], 4
      %s29 = int_to_ptr.vmem [resolvable:$true] %s28
      %34 = dma.hbm_to_vmem [thread:$0]  %s1, 256, %s29, [#allocation6], 128, 128, 8
    $region9: #{tpu_custom_call.1} parent=1 // pred_fallthru
      _
    // Predicated region
    $region10: #{tpu_custom_call.1} parent=1 // pred_check
      _
    $region11: #{tpu_custom_call.1} parent=1 // pred_check_branch
      %36 = sbr.rel (0) target = $region13
    $region12: #{tpu_custom_call.1} parent=1 // pred_region
      _
    $region13: #{tpu_custom_call.1} parent=1 // pred_fallthru
      _
    // Predicated region
    $region14: #{tpu_custom_call.1} parent=1 // pred_check
      _
    $region15: #{tpu_custom_call.1} parent=1 // pred_check_branch
      %38 = sbr.rel (0) target = $region17
    $region16: #{tpu_custom_call.1} parent=1 // pred_region
      %39 = dma.done [#allocation3], 256
    $region17: #{tpu_custom_call.1} parent=1 // pred_fallthru
      _
    // Predicated region
    $region18: #{tpu_custom_call.1} parent=1 // pred_check
      _
    $region19: #{tpu_custom_call.1} parent=1 // pred_check_branch
      %41 = sbr.rel (0) target = $region21
    $region20: #{tpu_custom_call.1} parent=1 // pred_region
      %42 = dma.done [#allocation6], 256
    $region21: #{tpu_custom_call.1} parent=1 // pred_fallthru
      _
    %v43 = vld [vmem:[#allocation2] sm:$0xff]
    %v44 = vld [vmem:[#allocation2 + $0x8] sm:$0xff]
    %v45 = vld [vmem:[#allocation5] sm:$0xff]
    %v46 = vld [vmem:[#allocation5 + $0x8] sm:$0xff]
    %v47 = vadd.f32 %v43, %v45
    %v48 = vadd.f32 %v44, %v46
    %vm49 = vcmask 261120
    %v50 = vsel %vm49, %v47, 0.0
    %v51 = vrot.slane %v50, 4
    %v52 = vadd.f32 %v50, %v51
    %v53 = vrot.slane %v52, 2
    %v54 = vadd.f32 %v52, %v53
    %v55 = vrot.slane %v54, 1
    %v56 = vadd.f32 %v54, %v55
    %v57 = vsel %vm49, %v48, 0.0
    %v58 = vrot.slane %v57, 4
    %v59 = vadd.f32 %v57, %v58
    %v60 = vrot.slane %v59, 2
    %v61 = vadd.f32 %v59, %v60
    %v62 = vrot.slane %v61, 1
    %v63 = vadd.f32 %v61, %v62
    %v64 = vrcp.pop 8.0
    %v65 = vmul.f32 %v56, %v64
    %v66 = vmul.f32 %v63, %v64
    %v67 = vsub.f32 %v47, %v65
    %v68 = vsub.f32 %v48, %v66
    %v69 = vmul.f32 %v67, %v67
    %v70 = vmul.f32 %v68, %v68
    %v71 = vsel %vm49, %v69, 0.0
    %v72 = vrot.slane %v71, 4
    %v73 = vadd.f32 %v71, %v72
    %v74 = vrot.slane %v73, 2
    %v75 = vadd.f32 %v73, %v74
    %v76 = vrot.slane %v75, 1
    %v77 = vadd.f32 %v75, %v76
    %v78 = vsel %vm49, %v70, 0.0
    %v79 = vrot.slane %v78, 4
    %v80 = vadd.f32 %v78, %v79
    %v81 = vrot.slane %v80, 2
    %v82 = vadd.f32 %v80, %v81
    %v83 = vrot.slane %v82, 1
    %v84 = vadd.f32 %v82, %v83
    %v85 = vmul.f32 %v77, %v64
    %v86 = vmul.f32 %v84, %v64
    %v87 = vadd.f32 %v85, 1e-05
    %v88 = vadd.f32 %v86, 1e-05
    %v89 = vrsqrt.pop %v87
    %v90 = vrsqrt.pop %v88
    %v91 = vld [vmem:[%s2] sm:$0x1]
    %v92 = vld [vmem:[%s2 + $0x1] sm:$0x1]
    %v93 = vmul.f32 %v67, %v89
    %v94 = vmul.f32 %v68, %v90
    %v95 = vlaneseq
    %v96 = vshrl.u32 %v95, 7
    %v97 = vsub.s32 0, %v96
    %v98 = vrot.slane %v91, %v97
    %v99 = vmul.f32 %v93, %v98
    %v100 = vmul.f32 %v94, %v98
    %v101 = vlaneseq
    %v102 = vshrl.u32 %v101, 7
    %v103 = vsub.s32 0, %v102
    %v104 = vrot.slane %v92, %v103
    %v105 = vadd.f32 %v99, %v104
    %v106 = vadd.f32 %v100, %v104
    %107 = vst.msk [vmem:[#allocation7] sm:$0xff] %vm49, %v105
    %108 = vst.msk [vmem:[#allocation7 + $0x8] sm:$0xff] %vm49, %v106
    // Predicated region
    $region22: #{tpu_custom_call.1} parent=1 // pred_check
      _
    $region23: #{tpu_custom_call.1} parent=1 // pred_check_branch
      %110 = sbr.rel (0) target = $region25
    $region24: #{tpu_custom_call.1} parent=1 // pred_region
      %s112 = ssub.s32 256, 256
      %113 = vsyncadd [#allocation4], %s112
      %s114 = sshll.u32 [#allocation7], 4
      %s115 = int_to_ptr.vmem [resolvable:$true] %s114
      %120 = dma.vmem_to_hbm [thread:$0]  %s115, 256, %s3, [#allocation4], 128, 128, 8
    $region25: #{tpu_custom_call.1} parent=1 // pred_fallthru
      _
    // Predicated region
    $region26: #{tpu_custom_call.1} parent=1 // pred_check
      _
    $region27: #{tpu_custom_call.1} parent=1 // pred_check_branch
      %122 = sbr.rel (0) target = $region29
    $region28: #{tpu_custom_call.1} parent=1 // pred_region
      %123 = dma.done [#allocation4], 256
    $region29: #{tpu_custom_call.1} parent=1 // pred_fallthru
      _
    %124 = vsyncpa [#allocation3], 1
    %125 = vsyncpa [#allocation6], 1
    %126 = vsyncpa [#allocation4], 1

</llo_original>
